<compile_context>
chip_gen: v6e
topology: v6e:2x2x1
jax: 0.10.0
libtpu: 0.0.40
codegen_flags: <defaults>
</compile_context>

<pallas_src>
import functools

import numpy as np
import jax
import jax.numpy as jnp
from jax import lax
from jax.experimental import pallas as pl
from jax.experimental.pallas import tpu as pltpu

POOL_SIZES = (1, 2, 3, 6)
EPS = 1e-5
_NEG = np.float32(-1e30)


# ----------------------- trace-time (numpy) constants -------------------------

def _interp_matrix_np(out_size, in_size):
    """(out_size, in_size) 1-D bilinear interpolation matrix, align_corners=True."""
    if in_size == 1:
        return np.ones((out_size, 1), np.float32)
    src = np.arange(out_size, dtype=np.float64) * (in_size - 1) / (out_size - 1)
    lo = np.clip(np.floor(src), 0, in_size - 2).astype(np.int64)
    frac = (src - lo).astype(np.float32)
    m = np.zeros((out_size, in_size), np.float32)
    m[np.arange(out_size), lo] += 1.0 - frac
    m[np.arange(out_size), lo + 1] += frac
    return m


def _pool_edges(size, p):
    """PyTorch AdaptiveMaxPool bin edges along one axis."""
    return [((i * size) // p, -(-((i + 1) * size) // p)) for i in range(p)]


def _nests(p_small, p_base, size):
    """True if every p_small bin equals the union of the p_base bins mapped to it."""
    if p_small > p_base:
        return False
    eb = _pool_edges(size, p_base)
    es = _pool_edges(size, p_small)
    groups = [[] for _ in range(p_small)]
    for ib, iv in enumerate(eb):
        groups[(ib * p_small) // p_base].append(iv)
    for i, (s, e) in enumerate(es):
        g = groups[i]
        if not g:
            return False
        if min(a for a, _ in g) != s or max(b for _, b in g) != e:
            return False
        if any(a < s or b > e for a, b in g):
            return False
    return True


def _pool_mask_add(H, W, p):
    """(p*p, HW) additive mask: 0 where pixel is in the bin, -1e30 elsewhere."""
    HW = H * W
    m = np.full((p * p, HW), _NEG, np.float32)
    ey, ex = _pool_edges(H, p), _pool_edges(W, p)
    for i, (h0, h1) in enumerate(ey):
        for j, (w0, w1) in enumerate(ex):
            mm = np.full((H, W), _NEG, np.float32)
            mm[h0:h1, w0:w1] = 0.0
            m[i * p + j] = mm.reshape(HW)
    return m


def _group_mask_add(p, pb):
    """(p*p, pb*pb) additive mask mapping base (pb) bins to nested (p) bins."""
    m = np.full((p * p, pb * pb), _NEG, np.float32)
    g = [(ib * p) // pb for ib in range(pb)]
    for iy in range(pb):
        for ix in range(pb):
            m[g[iy] * p + g[ix], iy * pb + ix] = 0.0
    return m


def _upsample_matrix(H, W, p):
    """(p*p, HW) bilinear (align_corners=True) upsample matrix: feat = z @ u."""
    HW = H * W
    wy, wx = _interp_matrix_np(H, p), _interp_matrix_np(W, p)
    u = np.zeros((p * p, HW), np.float32)
    for i in range(p):
        for j in range(p):
            u[i * p + j] = np.outer(wy[:, i], wx[:, j]).reshape(HW)
    return u


def _tap_masks(H, W):
    """(9, HW) validity masks for the 9 rolled 3x3-conv taps (row-major kh, kw)."""
    ys, xs = np.meshgrid(np.arange(H), np.arange(W), indexing="ij")
    rows = []
    for sy in (-1, 0, 1):
        for sx in (-1, 0, 1):
            ok = (ys + sy >= 0) & (ys + sy < H) & (xs + sx >= 0) & (xs + sx < W)
            rows.append(ok.reshape(H * W).astype(np.float32))
    return np.stack(rows, axis=0)


def _build_constants(H, W):
    base_b = int(np.argmax(POOL_SIZES))
    pb = POOL_SIZES[base_b]

    nested, direct = [], [base_b]
    for b, p in enumerate(POOL_SIZES):
        if b == base_b:
            continue
        (nested if (_nests(p, pb, H) and _nests(p, pb, W)) else direct).append(b)

    direct_plan, rows, off = {}, [], 0
    for b in direct:
        p = POOL_SIZES[b]
        direct_plan[b] = (off, p * p)
        rows.append(_pool_mask_add(H, W, p))
        off += p * p
    madd = np.concatenate(rows, axis=0)

    group_plan, rows, off = {}, [], 0
    for b in nested:
        p = POOL_SIZES[b]
        group_plan[b] = (off, p * p)
        rows.append(_group_mask_add(p, pb))
        off += p * p
    gadd = (np.concatenate(rows, axis=0) if rows
            else np.zeros((1, pb * pb), np.float32))   # dummy, never read

    u_list = [_upsample_matrix(H, W, p) for p in POOL_SIZES]
    tapm = _tap_masks(H, W)
    return madd, gadd, u_list, tapm, base_b, direct_plan, group_plan


# ------------------------ pltpu.roll direction probe ---------------------------

_ROLL_LIKE_JNP = None


def _probe_roll_like_jnp():
    """Tiny kernel that checks whether pltpu.roll matches jnp.roll's direction."""
    def k(x_ref, o_ref):
        o_ref[...] = pltpu.roll(x_ref[...], 1, 1)

    x = jax.lax.broadcasted_iota(jnp.float32, (8, 128), 1)
    out = pl.pallas_call(
        k, out_shape=jax.ShapeDtypeStruct((8, 128), jnp.float32))(x)
    # jnp.roll(x, 1, axis=1)[0, 0] == 127 ; opposite convention gives 1.
    return bool(out[0, 0] == 127.0)


# ------------------------------- Pallas kernel ---------------------------------

def _make_kernel(*, N, C_in, C_out, H, W, base_b, direct_plan, group_plan,
                 roll_like_jnp):
    NB = len(POOL_SIZES)
    HW = H * W
    C_cat = C_in + NB * C_out
    TAPS = [(sy, sx) for sy in (-1, 0, 1) for sx in (-1, 0, 1)]

    def kernel(x_ref, madd_ref, gadd_ref, tapm_ref, w1t_ref, b1t_ref, w3t_ref,
               b3t_ref, gamma_ref, beta_ref, *rest):
        u_refs = rest[:NB]
        out_ref = rest[NB]
        cat_ref = rest[NB + 1]
        slab_ref = rest[NB + 2]

        x_all = x_ref[...]                                    # (N*C_in, HW)

        # --- adaptive max pool: additive masks, hierarchical where bins nest ---
        pooled = [None] * NB
        madd = madd_ref[...]
        for b, (off, pp) in direct_plan.items():
            m = madd[off:off + pp, :]                         # (pp, HW)
            pooled[b] = jnp.max(x_all[:, None, :] + m[None, :, :], axis=-1)
        if group_plan:
            gadd = gadd_ref[...]
            base = pooled[base_b]                             # (N*C_in, pb*pb)
            for b, (off, pp) in group_plan.items():
                g = gadd[off:off + pp, :]                     # (pp, pb*pb)
                pooled[b] = jnp.max(base[:, None, :] + g[None, :, :], axis=-1)

        # --- per-branch 1x1 conv + bilinear upsample (upsample batched over N) ---
        feats = []
        for b in range(NB):
            pp = POOL_SIZES[b] ** 2
            w1_b, b1_b = w1t_ref[b], b1t_ref[b]               # (C_out,C_in),(C_out,1)
            u_b = u_refs[b][...]                              # (pp, HW)
            per_img = []
            for n in range(N):
                pn = pooled[b][n * C_in:(n + 1) * C_in, :]    # (C_in, pp)
                if pp == 1:
                    pn = pn * u_b                             # broadcast-upsample first
                per_img.append(jnp.dot(w1_b, pn,
                                       preferred_element_type=jnp.float32) + b1_b)
            stacked = jnp.concatenate(per_img, axis=0)        # (N*C_out, pp | HW)
            if pp == 1:
                feats.append(stacked)                         # already (N*C_out, HW)
            else:
                feats.append(jnp.dot(stacked, u_b,
                                     preferred_element_type=jnp.float32))

        # --- concat (VMEM scratch) + roll-based im2col slab (VMEM scratch) ---
        tapm = tapm_ref[...]                                  # (9, HW)
        for n in range(N):
            for b in range(NB):
                cat_ref[b * C_out:(b + 1) * C_out, :] = \
                    feats[b][n * C_out:(n + 1) * C_out, :]
            cat_ref[NB * C_out:NB * C_out + C_in, :] = \
                x_all[n * C_in:(n + 1) * C_in, :]
            cat = cat_ref[...]                                # (C_cat, HW)
            for t, (sy, sx) in enumerate(TAPS):
                s = sy * W + sx
                if s == 0:
                    patch = cat                               # centre tap: no shift/mask
                else:
                    shift = ((-s) if roll_like_jnp else s) % HW
                    patch = pltpu.roll(cat, shift, 1) * tapm[t:t + 1, :]
                slab_ref[t * C_cat:(t + 1) * C_cat, n * HW:(n + 1) * HW] = patch

        # --- 3x3 conv: ONE deep MXU matmul batched over the whole batch ---
        y = jnp.dot(w3t_ref[...], slab_ref[...],
                    preferred_element_type=jnp.float32) + b3t_ref[...]  # (C_out, N*HW)

        # --- training-mode BatchNorm2d (two-pass batch stats) + ReLU ---
        inv_cnt = 1.0 / float(N * HW)
        mean = jnp.sum(y, axis=1, keepdims=True) * inv_cnt
        d = y - mean
        var = jnp.sum(d * d, axis=1, keepdims=True) * inv_cnt
        scale = gamma_ref[...] * lax.rsqrt(var + EPS)
        yn = jnp.maximum(d * scale + beta_ref[...], 0.0)
        for n in range(N):
            out_ref[n] = yn[:, n * HW:(n + 1) * HW].astype(out_ref.dtype)

    return kernel


# ---------------------------------- wrapper ------------------------------------

def _zero_index_map(i, ndim):
    return (0,) * ndim


@functools.partial(jax.jit, static_argnames=("roll_like_jnp",))
def _psp_head_forward_impl(x_nchw, params, *, roll_like_jnp):
    N, C_in, H, W = x_nchw.shape
    HW = H * W
    NB = len(POOL_SIZES)
    C_out = params["w1"].shape[-1]
    C_cat = C_in + NB * C_out

    madd, gadd, u_list, tapm, base_b, direct_plan, group_plan = _build_constants(H, W)

    # NCHW -> (N*C_in, HW): free reshape, lane-dense everywhere, no transposes.
    x_flat = x_nchw.reshape(N * C_in, HW).astype(jnp.float32)
    w1t = jnp.transpose(params["w1"], (0, 2, 1)).astype(jnp.float32)    # (NB,C_out,C_in)
    b1t = jnp.transpose(params["b1"], (0, 2, 1)).astype(jnp.float32)    # (NB,C_out,1)
    w3t = jnp.transpose(params["w3"].reshape(9 * C_cat, C_out)).astype(jnp.float32)
    b3t = params["b3"].reshape(C_out, 1).astype(jnp.float32)
    gammat = params["gamma"].reshape(C_out, 1).astype(jnp.float32)
    betat = params["beta"].reshape(C_out, 1).astype(jnp.float32)

    kernel = _make_kernel(N=N, C_in=C_in, C_out=C_out, H=H, W=W, base_b=base_b,
                          direct_plan=direct_plan, group_plan=group_plan,
                          roll_like_jnp=roll_like_jnp)

    inputs = [x_flat, madd, gadd, tapm, w1t, b1t, w3t, b3t, gammat, betat] + u_list
    in_specs = [pl.BlockSpec(tuple(a.shape),
                             functools.partial(_zero_index_map, ndim=a.ndim))
                for a in inputs]

    out_flat = pl.pallas_call(
        kernel,
        out_shape=jax.ShapeDtypeStruct((N, C_out, HW), jnp.float32),
        grid_spec=pltpu.PrefetchScalarGridSpec(
            num_scalar_prefetch=0,
            grid=(1,),
            in_specs=in_specs,
            out_specs=pl.BlockSpec((N, C_out, HW),
                                   functools.partial(_zero_index_map, ndim=3)),
            scratch_shapes=[
                pltpu.VMEM((C_cat, HW), jnp.float32),            # cat
                pltpu.VMEM((9 * C_cat, N * HW), jnp.float32),    # im2col slab
            ],
        ),
        compiler_params=pltpu.CompilerParams(
            dimension_semantics=("arbitrary",),
            vmem_limit_bytes=32 * 1024 * 1024),
    )(*inputs)

    return out_flat.reshape(N, C_out, H, W)      # already NCHW


def psp_head_forward(x_nchw, params):
    global _ROLL_LIKE_JNP
    if _ROLL_LIKE_JNP is None:
        _ROLL_LIKE_JNP = _probe_roll_like_jnp()
    return _psp_head_forward_impl(x_nchw, params, roll_like_jnp=_ROLL_LIKE_JNP)


# ----------------------------- pure-JAX reference ------------------------------

def _adaptive_max_pool_nhwc(x, p):
    """AdaptiveMaxPool2d(p) on NHWC input, same bin edges as PyTorch."""
    _, H, W, _ = x.shape
    rows = []
    for i in range(p):
        h0, h1 = (i * H) // p, -(-((i + 1) * H) // p)
        cols = []
        for j in range(p):
            w0, w1 = (j * W) // p, -(-((j + 1) * W) // p)
            cols.append(jnp.max(x[:, h0:h1, w0:w1, :], axis=(1, 2)))
        rows.append(jnp.stack(cols, axis=1))
    return jnp.stack(rows, axis=1)  # (N, p, p, C)


def psp_head_reference(x_nchw, params):
    x = jnp.transpose(x_nchw, (0, 2, 3, 1)).astype(jnp.float32)
    _, H, W, _ = x.shape
    branches = []
    for b, p in enumerate(POOL_SIZES):
        pooled = _adaptive_max_pool_nhwc(x, p)
        z = jnp.einsum("npqc,cd->npqd", pooled, params["w1"][b]) + params["b1"][b, 0]
        wy = jnp.asarray(_interp_matrix_np(H, p))
        wx = jnp.asarray(_interp_matrix_np(W, p))
        branches.append(jnp.einsum("hp,npqd,wq->nhwd", wy, z, wx))
    cat = jnp.concatenate(branches + [x], axis=-1)
    y = lax.conv_general_dilated(cat, params["w3"], (1, 1), "SAME",
                                 dimension_numbers=("NHWC", "HWIO", "NHWC")) + params["b3"][0]
    mean = jnp.mean(y, axis=(0, 1, 2))
    var = jnp.mean(jnp.square(y - mean), axis=(0, 1, 2))
    out = jnp.maximum((y - mean) * lax.rsqrt(var + EPS) * params["gamma"][0]
                      + params["beta"][0], 0.0)
    return jnp.transpose(out, (0, 3, 1, 2))


# ------------------------------------ main -------------------------------------

if __name__ == "__main__":
    N, C_in, C_out, H, W = 2, 8, 8, 16, 16
    NB = len(POOL_SIZES)
    C_cat = C_in + NB * C_out  # 40
    # num_classes=3 in __init__ is unused by PSPHEAD.forward -> no parameter for it.

    key = jax.random.PRNGKey(0)
    k0, k1, k2, k3, k4 = jax.random.split(key, 5)
    x = jax.random.normal(k0, (N, C_in, H, W), jnp.float32)
    params = {
        "w1": 0.1 * jax.random.normal(k1, (NB, C_in, C_out), jnp.float32),    # 1x1 conv / branch
        "b1": 0.1 * jax.random.normal(k2, (NB, 1, C_out), jnp.float32),
        "w3": 0.1 * jax.random.normal(k3, (3, 3, C_cat, C_out), jnp.float32),  # 3x3 conv, HWIO
        "b3": 0.1 * jax.random.normal(k4, (1, C_out), jnp.float32),
        "gamma": jnp.ones((1, C_out), jnp.float32),   # BatchNorm2d default init
        "beta": jnp.zeros((1, C_out), jnp.float32),
    }

    out = jax.block_until_ready(psp_head_forward(x, params))
    ref = jax.block_until_ready(psp_head_reference(x, params))
    assert out.shape == (N, C_out, H, W), out.shape
    err = float(jnp.max(jnp.abs(out - ref)))
    if err > 5e-4:
        raise AssertionError(f"Pallas output mismatch vs JAX reference: max abs err = {err}")
    print("KERNEL_OK")
</pallas_src>

<mosaic_0001>
module attributes {stable_mosaic.version = 11 : i64} {
  func.func @k(%arg0: memref<8x128xf32, #tpu.memory_space<vmem>>, %arg1: memref<8x128xf32, #tpu.memory_space<vmem>>) attributes {dimension_semantics = [], scalar_prefetch = 0 : i64, scratch_operands = 0 : i64, tpu.core_type = #tpu.core_type<tc>} {
    %c0 = arith.constant 0 : index
    %c0_0 = arith.constant 0 : index
    %0 = vector.load %arg0[%c0, %c0_0] : memref<8x128xf32, #tpu.memory_space<vmem>>, vector<8x128xf32>
    %c1_i32 = arith.constant 1 : i32
    %1 = tpu.dynamic_rotate %0 by %c1_i32 dim 1 : vector<8x128xf32>, i32 -> vector<8x128xf32>
    %c0_1 = arith.constant 0 : index
    %c0_2 = arith.constant 0 : index
    %2 = vector.load %arg1[%c0_1, %c0_2] : memref<8x128xf32, #tpu.memory_space<vmem>>, vector<8x128xf32>
    tpu.vector_store %arg1[%c0_1, %c0_2], %1 {strides = array<i32>} : memref<8x128xf32, #tpu.memory_space<vmem>>, vector<8x128xf32>,
    return
  }
}

</mosaic_0001>

<llo_original>
// kernel: tpu_custom_call.1
$region0: #{tpu_custom_call.1}
  #allocation0 [shape = 'u32[]', space=smem, size = 0x4, offset = 0x4, fixed_abs, tag = 'smem constant byte address 0x4 - core index']
  #allocation1 [shape = 'u32[144,128]{1,0:T(1,128)}', space=vmem, size = 0x12000, scoped, tag = 'internal scratch']
  %s0 = inlined_call_operand.hbm [shape: f32[8,128], index: 0, kind: input, shape index: {}]
  %s1 = inlined_call_operand.hbm [shape: f32[8,128], index: 1, kind: output, shape index: {}]
  %s2 = sld [smem:[#allocation0]]
  $region18: #{tpu_custom_call.1} parent=0
    _
  %s4 = ssub.s32 1, %s2
  %s5 = scalar_select 0, %s4, %s2
  $region1: #{tpu_custom_call.1} parent=0
    #allocation2 [shape = 'u8[4096]{0}', space=vmem, size = 0x1000, scoped, tag = 'input window, operand 0, single buffered']
    #allocation3 [shape = 's32[1]{0}', space=sflag, size = 0x4, scoped, tag = 'scoped memory for tpu_custom_call.1']
    #allocation4 [shape = 's32[1]{0}', space=sflag, size = 0x4, scoped, tag = 'scoped memory for tpu_custom_call.1']
    #allocation5 [shape = 'u8[4096]{0}', space=vmem, size = 0x1000, scoped, tag = 'output window, operand 0, single buffered']
    %6 = vsyncpa [#allocation3], 0
    %7 = vsyncpa [#allocation4], 0
    // Predicated region
    $region2: #{tpu_custom_call.1} parent=1 // pred_check
      _
    $region3: #{tpu_custom_call.1} parent=1 // pred_check_branch
      %9 = sbr.rel (0) target = $region5
    $region4: #{tpu_custom_call.1} parent=1 // pred_region
      %s11 = ssub.s32 128, 128
      %12 = vsyncadd [#allocation3], %s11
      %s14 = sshll.u32 [#allocation2], 4
      %s15 = int_to_ptr.vmem [resolvable:$true] %s14
      %17 = dma.hbm_to_vmem [thread:$0]  %s0, 128, %s15, [#allocation3]
    $region5: #{tpu_custom_call.1} parent=1 // pred_fallthru
      _
    // Predicated region
    $region6: #{tpu_custom_call.1} parent=1 // pred_check
      _
    $region7: #{tpu_custom_call.1} parent=1 // pred_check_branch
      %19 = sbr.rel (0) target = $region9
    $region8: #{tpu_custom_call.1} parent=1 // pred_region
      %20 = dma.done [#allocation3], 128
    $region9: #{tpu_custom_call.1} parent=1 // pred_fallthru
      _
    %v21 = vld [vmem:[#allocation2] sm:$0xff]
    %22 = vrot.lane.b32.xlu0 %v21, 1
    %v23 = vpop.permute.xlu0 %22
    %24 = vst [vmem:[#allocation5] sm:$0xff] %v23
    // Predicated region
    $region10: #{tpu_custom_call.1} parent=1 // pred_check
      _
    $region11: #{tpu_custom_call.1} parent=1 // pred_check_branch
      %26 = sbr.rel (0) target = $region13
    $region12: #{tpu_custom_call.1} parent=1 // pred_region
      %s28 = ssub.s32 128, 128
      %29 = vsyncadd [#allocation4], %s28
      %s31 = sshll.u32 [#allocation5], 4
      %s32 = int_to_ptr.vmem [resolvable:$true] %s31
      %34 = dma.vmem_to_hbm [thread:$0]  %s32, 128, %s1, [#allocation4]
    $region13: #{tpu_custom_call.1} parent=1 // pred_fallthru
      _
    // Predicated region
    $region14: #{tpu_custom_call.1} parent=1 // pred_check
      _
    $region15: #{tpu_custom_call.1} parent=1 // pred_check_branch
      %36 = sbr.rel (0) target = $region17
    $region16: #{tpu_custom_call.1} parent=1 // pred_region
      %37 = dma.done [#allocation4], 128
    $region17: #{tpu_custom_call.1} parent=1 // pred_fallthru
      _
    %38 = vsyncpa [#allocation3], 1
    %39 = vsyncpa [#allocation4], 1

</llo_original>
